<compile_context>
chip_gen: v7x
topology: tpu7x:2x2x1
jax: 0.10.0
libtpu: 0.0.40
codegen_flags: <defaults>
</compile_context>

<pallas_src>
import functools

import jax
import jax.numpy as jnp
from jax.experimental import pallas as pl
from jax.experimental.pallas import tpu as pltpu

DROPOUT_P = 0.1


def _round_up(x, m):
    return ((x + m - 1) // m) * m


def block_kernel(x_ref, w_ref, b_ref, *rest,
                 training: bool, keep_threshold: int, scale: float):
    if training:
        bits_ref, o_ref = rest
    else:
        (o_ref,) = rest

    # Linear: bf16 x / W on the MXU, f32 accumulation.  b_ref is (1, tn) and
    # broadcasts over rows.
    h = jnp.dot(x_ref[...], w_ref[...], preferred_element_type=jnp.float32)
    h = h + b_ref[...]

    # Activation: ReLU (module takes the activation class; instantiated nn.ReLU).
    h = jnp.maximum(h, 0.0)

    if training:
        # Inverted dropout, matching torch.nn.Dropout(p) in train mode:
        # keep with prob (1-p), scale kept values by 1/(1-p).
        # Integer-threshold test: bits uniform in [0, 2^31-1), keep iff
        # bits >= p * (2^31 - 1).
        keep = bits_ref[...] >= jnp.int32(keep_threshold)
        h = jnp.where(keep, h * scale, 0.0)
    # else: eval mode -> dropout is identity

    o_ref[...] = h.astype(o_ref.dtype)


def block_forward(x, w_t, b, *, training=True, dropout_key=None,
                  dropout_p=DROPOUT_P, tm=256, tn=256):
    """x: [B, D_in] f32, w_t: [D_in, D_out] f32, b: [D_out] f32."""
    B, D_in = x.shape
    D_out = w_t.shape[1]

    # Pad to lane/sublane-friendly shapes: lane axes -> multiples of 128,
    # row axis -> multiple of 8.  Zero padding does not change the matmul.
    D_in_p = _round_up(D_in, 128)
    D_out_p = _round_up(max(D_out, 128), 128)
    B_p = _round_up(B, 8)

    tm = min(tm, B_p)
    tn = min(tn, D_out_p)
    B_p = _round_up(B_p, tm)
    D_out_p = _round_up(D_out_p, tn)
    grid_m = B_p // tm
    grid_n = D_out_p // tn

    # bf16 MXU inputs, f32 accumulation / elementwise / bias.
    x_p = jnp.zeros((B_p, D_in_p), jnp.bfloat16).at[:B, :D_in].set(
        x.astype(jnp.bfloat16))
    w_p = jnp.zeros((D_in_p, D_out_p), jnp.bfloat16).at[:D_in, :D_out].set(
        w_t.astype(jnp.bfloat16))
    b_p = jnp.zeros((1, D_out_p), jnp.float32).at[0, :D_out].set(
        b.astype(jnp.float32))

    in_specs = [
        pl.BlockSpec((tm, D_in_p), lambda j, i: (i, 0)),   # x: stream over B
        pl.BlockSpec((D_in_p, tn), lambda j, i: (0, j)),   # W^T: resident per N tile
        pl.BlockSpec((1, tn), lambda j, i: (0, j)),        # bias
    ]
    args = [x_p, w_p, b_p]

    int32_max = jnp.iinfo(jnp.int32).max
    keep_threshold = int(round(dropout_p * (int32_max - 1)))
    scale = 1.0 / (1.0 - dropout_p)

    if training:
        assert dropout_key is not None
        bits_p = jax.random.randint(
            dropout_key, (B_p, D_out_p), 0, int32_max, dtype=jnp.int32)
        in_specs.append(pl.BlockSpec((tm, tn), lambda j, i: (i, j)))
        args.append(bits_p)

    kernel = functools.partial(
        block_kernel, training=training,
        keep_threshold=keep_threshold, scale=scale)

    out_p = pl.pallas_call(
        kernel,
        out_shape=jax.ShapeDtypeStruct((B_p, D_out_p), jnp.float32),
        # N outer / B inner: the W^T and bias blocks only change when the
        # outer index advances, so the weight stays VMEM-resident across the
        # whole inner B sweep; x/out are streamed with double-buffered DMA.
        grid=(grid_n, grid_m),
        in_specs=in_specs,
        out_specs=pl.BlockSpec((tm, tn), lambda j, i: (i, j)),
        compiler_params=pltpu.CompilerParams(
            dimension_semantics=("parallel", "parallel"),
            vmem_limit_bytes=32 * 1024 * 1024,
        ),
    )(*args)

    return out_p[:B, :D_out]


if __name__ == "__main__":
    # Small shapes implied by the module: Linear(dim_input -> dim_output).
    B, D_IN, D_OUT = 8, 32, 64

    key = jax.random.PRNGKey(0)
    kx, kw, kb, kd = jax.random.split(key, 4)

    x = jax.random.normal(kx, (B, D_IN), dtype=jnp.float32)

    # Deterministic parameter init (Kaiming-uniform-ish like nn.Linear defaults).
    bound = 1.0 / (D_IN ** 0.5)
    w = jax.random.uniform(kw, (D_OUT, D_IN), jnp.float32, -bound, bound)  # PyTorch layout
    b = jax.random.uniform(kb, (D_OUT,), jnp.float32, -bound, bound)
    w_t = w.T  # [D_in, D_out] for the kernel

    out_train = jax.block_until_ready(
        block_forward(x, w_t, b, training=True, dropout_key=kd))
    out_eval = jax.block_until_ready(
        block_forward(x, w_t, b, training=False))

    # Reference with the same bf16-rounded inputs the kernel sees.
    xb = x.astype(jnp.bfloat16).astype(jnp.float32)
    wb = w_t.astype(jnp.bfloat16).astype(jnp.float32)
    ref_eval = jnp.maximum(xb @ wb + b[None, :], 0.0)

    assert out_train.shape == (B, D_OUT)
    assert out_eval.shape == (B, D_OUT)
    # Eval mode: dropout is identity -> relu(x @ W^T + b).
    assert jnp.allclose(out_eval, ref_eval, atol=1e-3, rtol=1e-3)
    # Train mode: every nonzero output equals ref * 1/(1-p) at that position.
    scale = 1.0 / (1.0 - DROPOUT_P)
    nz = out_train != 0.0
    assert bool(jnp.all(
        jnp.where(nz, jnp.abs(out_train - ref_eval * scale), 0.0) < 1e-2))

    print("KERNEL_OK")
</pallas_src>

<mosaic_0001>
module attributes {stable_mosaic.version = 11 : i64} {
  func.func @block_kernel(%arg0: i32, %arg1: i32, %arg2: memref<8x128xbf16, #tpu.memory_space<vmem>>, %arg3: memref<128x128xbf16, #tpu.memory_space<vmem>>, %arg4: memref<1x128xf32, #tpu.memory_space<vmem>>, %arg5: memref<8x128xi32, #tpu.memory_space<vmem>>, %arg6: memref<8x128xf32, #tpu.memory_space<vmem>>) attributes {dimension_semantics = [#tpu.dimension_semantics<parallel>, #tpu.dimension_semantics<parallel>], iteration_bounds = array<i64: 1, 1>, scalar_prefetch = 0 : i64, scratch_operands = 0 : i64, tpu.core_type = #tpu.core_type<tc>, window_params = [{transform_indices = @transform_0, window_bounds = array<i64: 8, 128>}, {transform_indices = @transform_1, window_bounds = array<i64: 128, 128>}, {transform_indices = @transform_2, window_bounds = array<i64: 1, 128>}, {transform_indices = @transform_3, window_bounds = array<i64: 8, 128>}, {transform_indices = @transform_4, window_bounds = array<i64: 8, 128>}]} {
    %c0 = arith.constant 0 : index
    %c0_0 = arith.constant 0 : index
    %0 = vector.load %arg2[%c0, %c0_0] : memref<8x128xbf16, #tpu.memory_space<vmem>>, vector<8x128xbf16>
    %c0_1 = arith.constant 0 : index
    %c0_2 = arith.constant 0 : index
    %1 = vector.load %arg3[%c0_1, %c0_2] : memref<128x128xbf16, #tpu.memory_space<vmem>>, vector<128x128xbf16>
    %cst = arith.constant dense<0.000000e+00> : vector<8x128xf32>
    %2 = tpu.matmul %0, %1, %cst {dimension_numbers = #tpu.dot_dimension_numbers<[1], [0], [0], [1], [0, 0, 1, 1], [], []>} : vector<8x128xbf16>, vector<128x128xbf16>, vector<8x128xf32> -> vector<8x128xf32>
    %c0_3 = arith.constant 0 : index
    %c0_4 = arith.constant 0 : index
    %3 = vector.load %arg4[%c0_3, %c0_4] : memref<1x128xf32, #tpu.memory_space<vmem>>, vector<1x128xf32>
    %4 = vector.broadcast %3 : vector<1x128xf32> to vector<8x128xf32>
    %5 = arith.addf %2, %4 : vector<8x128xf32>
    %cst_5 = arith.constant 0.000000e+00 : f32
    %6 = vector.broadcast %cst_5 : f32 to vector<8x128xf32>
    %7 = arith.maximumf %5, %6 : vector<8x128xf32>
    %c0_6 = arith.constant 0 : index
    %c0_7 = arith.constant 0 : index
    %8 = vector.load %arg5[%c0_6, %c0_7] : memref<8x128xi32, #tpu.memory_space<vmem>>, vector<8x128xi32>
    %c214748365_i32 = arith.constant 214748365 : i32
    %9 = vector.broadcast %c214748365_i32 : i32 to vector<8x128xi32>
    %10 = arith.cmpi sge, %8, %9 : vector<8x128xi32>
    %cst_8 = arith.constant 1.11111116 : f32
    %11 = vector.broadcast %cst_8 : f32 to vector<8x128xf32>
    %12 = arith.mulf %7, %11 : vector<8x128xf32>
    %cst_9 = arith.constant 0.000000e+00 : f32
    %13 = vector.broadcast %cst_9 : f32 to vector<8x128xf32>
    %14 = arith.select %10, %12, %13 : vector<8x128xi1>, vector<8x128xf32>
    %c0_10 = arith.constant 0 : index
    %c0_11 = arith.constant 0 : index
    %15 = vector.load %arg6[%c0_10, %c0_11] : memref<8x128xf32, #tpu.memory_space<vmem>>, vector<8x128xf32>
    tpu.vector_store %arg6[%c0_10, %c0_11], %14 {strides = array<i32>} : memref<8x128xf32, #tpu.memory_space<vmem>>, vector<8x128xf32>,
    return
  }
  func.func @transform_0(%arg0: i32, %arg1: i32) -> (i32, i32) {
    %c0_i32 = arith.constant 0 : i32
    %c0_i32_0 = arith.constant 0 : i32
    return %arg1, %c0_i32 : i32, i32
  }
  func.func @transform_1(%arg0: i32, %arg1: i32) -> (i32, i32) {
    %c0_i32 = arith.constant 0 : i32
    %c0_i32_0 = arith.constant 0 : i32
    return %c0_i32, %arg0 : i32, i32
  }
  func.func @transform_2(%arg0: i32, %arg1: i32) -> (i32, i32) {
    %c0_i32 = arith.constant 0 : i32
    %c0_i32_0 = arith.constant 0 : i32
    return %c0_i32, %arg0 : i32, i32
  }
  func.func @transform_3(%arg0: i32, %arg1: i32) -> (i32, i32) {
    %c0_i32 = arith.constant 0 : i32
    return %arg1, %arg0 : i32, i32
  }
  func.func @transform_4(%arg0: i32, %arg1: i32) -> (i32, i32) {
    %c0_i32 = arith.constant 0 : i32
    return %arg1, %arg0 : i32, i32
  }
}

</mosaic_0001>

<llo_original>
// kernel: tpu_custom_call.1
$region0: #{tpu_custom_call.1}
  #allocation0 [shape = 'u32[]', space=smem, size = 0x4, offset = 0x4, fixed_abs, tag = 'smem constant byte address 0x4 - core index']
  #allocation1 [shape = 'u32[144,128]{1,0:T(1,128)}', space=vmem, size = 0x12000, scoped, tag = 'internal scratch']
  %s0 = inlined_call_operand.hbm [shape: bf16[8,128], index: 0, kind: input, shape index: {}]
  %s1 = inlined_call_operand.hbm [shape: bf16[128,128], index: 1, kind: input, shape index: {}]
  %s2 = inlined_call_operand.vmem [shape: f32[1,128], index: 2, kind: input, shape index: {}]
  %s3 = inlined_call_operand.vmem [shape: s32[8,128], index: 3, kind: input, shape index: {}]
  %s4 = inlined_call_operand.hbm [shape: f32[8,128], index: 4, kind: output, shape index: {}]
  %s5 = sld [smem:[#allocation0]]
  $region34: #{tpu_custom_call.1} parent=0
    _
  %s7 = ssub.s32 1, %s5
  %s8 = scalar_select 0, %s7, %s5
  $region1: #{tpu_custom_call.1} parent=0
    #allocation2 [shape = 'u8[2048]{0}', space=vmem, size = 0x800, scoped, tag = 'input window, operand 0, single buffered']
    #allocation3 [shape = 's32[1]{0}', space=sflag, size = 0x4, scoped, tag = 'scoped memory for tpu_custom_call.1']
    #allocation4 [shape = 's32[1]{0}', space=sflag, size = 0x4, scoped, tag = 'scoped memory for tpu_custom_call.1']
    #allocation5 [shape = 'u8[32768]{0}', space=vmem, size = 0x8000, scoped, tag = 'input window, operand 1, single buffered']
    #allocation6 [shape = 's32[1]{0}', space=sflag, size = 0x4, scoped, tag = 'scoped memory for tpu_custom_call.1']
    #allocation7 [shape = 'u8[4096]{0}', space=vmem, size = 0x1000, scoped, tag = 'output window, operand 0, single buffered']
    %9 = vsyncpa [#allocation3], 0
    %10 = vsyncpa [#allocation6], 0
    %11 = vsyncpa [#allocation4], 0
    // Predicated region
    $region2: #{tpu_custom_call.1} parent=1 // pred_check
      _
    $region3: #{tpu_custom_call.1} parent=1 // pred_check_branch
      %13 = sbr.rel (0) target = $region5
    $region4: #{tpu_custom_call.1} parent=1 // pred_region
      %s15 = ssub.s32 64, 64
      %16 = vsyncadd [#allocation3], %s15
      %s18 = sshll.u32 [#allocation2], 4
      %s19 = int_to_ptr.vmem [resolvable:$true] %s18
      %21 = dma.hbm_to_vmem [thread:$0]  %s0, 64, %s19, [#allocation3]
    $region5: #{tpu_custom_call.1} parent=1 // pred_fallthru
      _
    // Predicated region
    $region6: #{tpu_custom_call.1} parent=1 // pred_check
      _
    $region7: #{tpu_custom_call.1} parent=1 // pred_check_branch
      %23 = sbr.rel (0) target = $region9
    $region8: #{tpu_custom_call.1} parent=1 // pred_region
      %s25 = ssub.s32 1024, 1024
      %26 = vsyncadd [#allocation6], %s25
      %s27 = sshll.u32 [#allocation5], 4
      %s28 = int_to_ptr.vmem [resolvable:$true] %s27
      %33 = dma.hbm_to_vmem [thread:$0]  %s1, 1024, %s28, [#allocation6], 64, 64, 4
    $region9: #{tpu_custom_call.1} parent=1 // pred_fallthru
      _
    // Predicated region
    $region10: #{tpu_custom_call.1} parent=1 // pred_check
      _
    $region11: #{tpu_custom_call.1} parent=1 // pred_check_branch
      %35 = sbr.rel (0) target = $region13
    $region12: #{tpu_custom_call.1} parent=1 // pred_region
      _
    $region13: #{tpu_custom_call.1} parent=1 // pred_fallthru
      _
    // Predicated region
    $region14: #{tpu_custom_call.1} parent=1 // pred_check
      _
    $region15: #{tpu_custom_call.1} parent=1 // pred_check_branch
      %37 = sbr.rel (0) target = $region17
    $region16: #{tpu_custom_call.1} parent=1 // pred_region
      _
    $region17: #{tpu_custom_call.1} parent=1 // pred_fallthru
      _
    // Predicated region
    $region18: #{tpu_custom_call.1} parent=1 // pred_check
      _
    $region19: #{tpu_custom_call.1} parent=1 // pred_check_branch
      %39 = sbr.rel (0) target = $region21
    $region20: #{tpu_custom_call.1} parent=1 // pred_region
      %40 = dma.done [#allocation3], 64
    $region21: #{tpu_custom_call.1} parent=1 // pred_fallthru
      _
    // Predicated region
    $region22: #{tpu_custom_call.1} parent=1 // pred_check
      _
    $region23: #{tpu_custom_call.1} parent=1 // pred_check_branch
      %42 = sbr.rel (0) target = $region25
    $region24: #{tpu_custom_call.1} parent=1 // pred_region
      %43 = dma.done [#allocation6], 1024
    $region25: #{tpu_custom_call.1} parent=1 // pred_fallthru
      _
    %v45 = vld [vmem:[#allocation2] sm:$0xf]
    %v46 = vld [vmem:[#allocation5] sm:$0xf]
    %v47 = vld [vmem:[#allocation5 + $0x4] sm:$0xf]
    %v48 = vld [vmem:[#allocation5 + $0x8] sm:$0xf]
    %v49 = vld [vmem:[#allocation5 + $0xc] sm:$0xf]
    %v50 = vld [vmem:[#allocation5 + $0x10] sm:$0xf]
    %v51 = vld [vmem:[#allocation5 + $0x14] sm:$0xf]
    %v52 = vld [vmem:[#allocation5 + $0x18] sm:$0xf]
    %v53 = vld [vmem:[#allocation5 + $0x1c] sm:$0xf]
    %v54 = vld [vmem:[#allocation5 + $0x20] sm:$0xf]
    %v55 = vld [vmem:[#allocation5 + $0x24] sm:$0xf]
    %v56 = vld [vmem:[#allocation5 + $0x28] sm:$0xf]
    %v57 = vld [vmem:[#allocation5 + $0x2c] sm:$0xf]
    %v58 = vld [vmem:[#allocation5 + $0x30] sm:$0xf]
    %v59 = vld [vmem:[#allocation5 + $0x34] sm:$0xf]
    %v60 = vld [vmem:[#allocation5 + $0x38] sm:$0xf]
    %v61 = vld [vmem:[#allocation5 + $0x3c] sm:$0xf]
    %v62 = vld [vmem:[%s2] sm:$0x1]
    %v64 = vlaneseq
    %v65 = vshrl.u32 %v64, 7
    %v66 = vsub.s32 0, %v65
    %v67 = vrot.slane %v62, %v66
    %v85 = vunpack.c.l.b16 %v46
    %v86 = vunpack.c.l.b16 %v47
    %v87 = vunpack.c.l.b16 %v48
    %v88 = vunpack.c.l.b16 %v49
    %v89 = vunpack.c.l.b16 %v50
    %v90 = vunpack.c.l.b16 %v51
    %v91 = vunpack.c.l.b16 %v52
    %v92 = vunpack.c.l.b16 %v53
    %v93 = vunpack.c.l.b16 %v54
    %v94 = vunpack.c.l.b16 %v55
    %v95 = vunpack.c.l.b16 %v56
    %v96 = vunpack.c.l.b16 %v57
    %v97 = vunpack.c.l.b16 %v58
    %v98 = vunpack.c.l.b16 %v59
    %v99 = vunpack.c.l.b16 %v60
    %v100 = vunpack.c.l.b16 %v61
    %v101 = vpack.c.b16 %v86, %v85
    %v102 = vpack.c.b16 %v88, %v87
    %v103 = vpack.c.b16 %v90, %v89
    %v104 = vpack.c.b16 %v92, %v91
    %v105 = vpack.c.b16 %v94, %v93
    %v106 = vpack.c.b16 %v96, %v95
    %v107 = vpack.c.b16 %v98, %v97
    %v108 = vpack.c.b16 %v100, %v99
    %117 = vmatprep.subr.bf16.mxu0 0
    %118 = vmatpush1.bf16.msra.mxu0 %v101
    %119 = vmatprep.subr.bf16.mxu0 0
    %120 = vmatpush1.bf16.msra.mxu0 %v102
    %121 = vmatprep.subr.bf16.mxu0 0
    %122 = vmatpush1.bf16.msra.mxu0 %v103
    %123 = vmatprep.subr.bf16.mxu0 0
    %124 = vmatpush1.bf16.msra.mxu0 %v104
    %125 = vmatprep.subr.bf16.mxu0 0
    %126 = vmatpush1.bf16.msra.mxu0 %v105
    %127 = vmatprep.subr.bf16.mxu0 0
    %128 = vmatpush1.bf16.msra.mxu0 %v106
    %129 = vmatprep.subr.bf16.mxu0 0
    %130 = vmatpush1.bf16.msra.mxu0 %v107
    %131 = vmatprep.subr.bf16.mxu0 0
    %132 = vmatpush1.bf16.msra.mxu0 %v108
    %133 = vmatprep.subr.bf16.mxu0 0
    %134 = vmatpush1.bf16.msra.mxu0 0
    %135 = vmatprep.subr.bf16.mxu0 0
    %136 = vmatpush1.bf16.msra.mxu0 0
    %137 = vmatprep.subr.bf16.mxu0 0
    %138 = vmatpush1.bf16.msra.mxu0 0
    %139 = vmatprep.subr.bf16.mxu0 0
    %140 = vmatpush1.bf16.msra.mxu0 0
    %141 = vmatprep.subr.bf16.mxu0 0
    %142 = vmatpush1.bf16.msra.mxu0 0
    %143 = vmatprep.subr.bf16.mxu0 0
    %144 = vmatpush1.bf16.msra.mxu0 0
    %145 = vmatprep.subr.bf16.mxu0 0
    %146 = vmatpush1.bf16.msra.mxu0 0
    %147 = vmatprep.subr.bf16.mxu0 0
    %148 = vmatpush1.bf16.msra.mxu0 0
    %149 = vmatprep.mubr.bf16.mxu0 0
    %150 = vmatmul.mubr.bf16.gmra.mrb[0].mxu0 %v45
    %v151 = vpop.f32.mrb[0].mxu0
    %v152 = vadd.f32 %v67, %v151
    %v153 = vpop.f32.mrb[0].mxu0
    %v154 = vpop.f32.mrb[0].mxu0
    %v155 = vpop.f32.mrb[0].mxu0
    %156 = vdwg.mxu0
    %v157 = vmax.f32 %v152, 0.0
    %v158 = vld [vmem:[%s3] sm:$0xff]
    %vm159 = vcmp.ge.s32.totalorder %v158, 214748365
    %v160 = vmul.f32 %v157, 1.1111112
    %v161 = vsel %vm159, %v160, 0.0
    %162 = vst [vmem:[#allocation7] sm:$0xff] %v161
    // Predicated region
    $region26: #{tpu_custom_call.1} parent=1 // pred_check
      _
    $region27: #{tpu_custom_call.1} parent=1 // pred_check_branch
      %164 = sbr.rel (0) target = $region29
    $region28: #{tpu_custom_call.1} parent=1 // pred_region
      %s166 = ssub.s32 128, 128
      %167 = vsyncadd [#allocation4], %s166
      %s169 = sshll.u32 [#allocation7], 4
      %s170 = int_to_ptr.vmem [resolvable:$true] %s169
      %172 = dma.vmem_to_hbm [thread:$0]  %s170, 128, %s4, [#allocation4]
    $region29: #{tpu_custom_call.1} parent=1 // pred_fallthru
      _
    // Predicated region
    $region30: #{tpu_custom_call.1} parent=1 // pred_check
      _
    $region31: #{tpu_custom_call.1} parent=1 // pred_check_branch
      %174 = sbr.rel (0) target = $region33
    $region32: #{tpu_custom_call.1} parent=1 // pred_region
      %175 = dma.done [#allocation4], 128
    $region33: #{tpu_custom_call.1} parent=1 // pred_fallthru
      _
    %176 = vsyncpa [#allocation3], 1
    %177 = vsyncpa [#allocation6], 1
    %178 = vsyncpa [#allocation4], 1

</llo_original>
